<compile_context>
chip_gen: v7x
topology: tpu7x:2x2x1
jax: 0.10.0
libtpu: 0.0.40
codegen_flags: <defaults>
</compile_context>

<pallas_src>
import jax
import jax.numpy as jnp
from jax.experimental import pallas as pl
from jax.experimental.pallas import tpu as pltpu


def _mlp_kernel(x_ref, w1_ref, b1_ref, w2_ref, b2_ref, o_ref):
    # x:  [TB, D_in] (bf16)  w1: [D_in, H] (bf16)  b1: [1, H] (f32)
    # w2: [H, D_out] (bf16)  b2: [1, D_out] (f32)  o:  [TB, D_out] (f32)
    h = jnp.dot(x_ref[...], w1_ref[...], preferred_element_type=jnp.float32)
    h = jnp.maximum(h + b1_ref[...], 0.0)          # f32 elementwise (v5e-safe)
    logits = jnp.dot(h.astype(w2_ref.dtype), w2_ref[...],
                     preferred_element_type=jnp.float32)
    o_ref[...] = (logits + b2_ref[...]).astype(o_ref.dtype)


def mlp_forward_pallas(x_flat_bf16, w1, b1, w2, b2, *, tb=128):
    """x_flat_bf16: [B_pad, D_in] with B_pad a multiple of tb."""
    B_pad, D_in = x_flat_bf16.shape
    H = w1.shape[1]
    D_out = w2.shape[1]
    assert B_pad % tb == 0

    return pl.pallas_call(
        _mlp_kernel,
        out_shape=jax.ShapeDtypeStruct((B_pad, D_out), jnp.float32),
        grid_spec=pltpu.PrefetchScalarGridSpec(
            num_scalar_prefetch=0,
            grid=(B_pad // tb,),
            in_specs=[
                pl.BlockSpec((tb, D_in), lambda i: (i, 0)),   # x: tiled over batch
                pl.BlockSpec((D_in, H), lambda i: (0, 0)),    # w1: VMEM-resident
                pl.BlockSpec((1, H), lambda i: (0, 0)),       # b1
                pl.BlockSpec((H, D_out), lambda i: (0, 0)),   # w2
                pl.BlockSpec((1, D_out), lambda i: (0, 0)),   # b2
            ],
            out_specs=pl.BlockSpec((tb, D_out), lambda i: (i, 0)),
        ),
        compiler_params=pltpu.CompilerParams(
            dimension_semantics=("parallel",),  # shards batch tiles across TCs (v7x)
        ),
    )(x_flat_bf16, w1, b1, w2, b2)


class NormalNNPallas:
    """JAX/Pallas port of NormalNN's inference path (forward only)."""

    # Batch tile: MXU M granule on v5e, full sublanes everywhere.
    TB = 128

    def __init__(self, in_dim, hidden_dim, out_dim, valid_out_dim, key):
        self.out_dim = out_dim
        self.valid_out_dim = valid_out_dim
        k1, k2, k3, k4 = jax.random.split(key, 4)
        # Deterministic, PyTorch-Linear-like uniform init.
        lim1 = 1.0 / (in_dim ** 0.5)
        lim2 = 1.0 / (hidden_dim ** 0.5)
        # Weights stored bf16 (bandwidth-bound DMA halved); biases stay f32.
        self.w1 = jax.random.uniform(
            k1, (in_dim, hidden_dim), jnp.float32, -lim1, lim1).astype(jnp.bfloat16)
        self.b1 = jax.random.uniform(k2, (1, hidden_dim), jnp.float32, -lim1, lim1)
        self.w2 = jax.random.uniform(
            k3, (hidden_dim, out_dim), jnp.float32, -lim2, lim2).astype(jnp.bfloat16)
        self.b2 = jax.random.uniform(k4, (1, out_dim), jnp.float32, -lim2, lim2)

    def forward(self, x_nchw):
        B = x_nchw.shape[0]
        x_flat = x_nchw.reshape(B, -1).astype(jnp.bfloat16)  # glue: flatten NCHW
        # Pad batch to a multiple of TB (zeros), run tiled kernel, then de-pad.
        B_pad = pl.cdiv(B, self.TB) * self.TB
        if B_pad != B:
            x_flat = jnp.pad(x_flat, ((0, B_pad - B), (0, 0)))
        logits = mlp_forward_pallas(x_flat, self.w1, self.b1, self.w2, self.b2,
                                    tb=self.TB)
        # NormalNN.forward: slice to currently-valid output dims (outside the
        # kernel so the in-kernel output stays lane-dense).
        return logits[:B, : self.valid_out_dim]


def _reference_forward(model, x_nchw):
    # Mirrors the kernel's precision: bf16 operands, f32 accumulation.
    B = x_nchw.shape[0]
    xf = x_nchw.reshape(B, -1).astype(jnp.bfloat16)
    h = jnp.dot(xf, model.w1, preferred_element_type=jnp.float32)
    h = jnp.maximum(h + model.b1, 0.0)
    logits = jnp.dot(h.astype(jnp.bfloat16), model.w2,
                     preferred_element_type=jnp.float32)
    return (logits + model.b2)[:, : model.valid_out_dim]


if __name__ == "__main__":
    key = jax.random.PRNGKey(0)
    kx, kp = jax.random.split(key)

    # Small shapes consistent with an image-classification forward:
    B, C, Hs, Ws = 2, 4, 16, 16          # NCHW input
    in_dim = C * Hs * Ws                 # 1024
    hidden = 128
    out_dim = 128
    valid_out_dim = 10                   # NormalNN's incremental-class slice

    x = jax.random.normal(kx, (B, C, Hs, Ws), dtype=jnp.float32)
    model = NormalNNPallas(in_dim, hidden, out_dim, valid_out_dim, kp)

    out = model.forward(x)
    out = jax.block_until_ready(out)

    ref = _reference_forward(model, x)
    assert out.shape == (B, valid_out_dim), out.shape
    assert jnp.allclose(out, ref, atol=2e-2, rtol=2e-2), "mismatch vs reference"

    print("KERNEL_OK")
</pallas_src>

<mosaic_0001>
module attributes {stable_mosaic.version = 11 : i64} {
  func.func @_mlp_kernel(%arg0: i32, %arg1: memref<128x1024xbf16, #tpu.memory_space<vmem>>, %arg2: memref<1024x128xbf16, #tpu.memory_space<vmem>>, %arg3: memref<1x128xf32, #tpu.memory_space<vmem>>, %arg4: memref<128x128xbf16, #tpu.memory_space<vmem>>, %arg5: memref<1x128xf32, #tpu.memory_space<vmem>>, %arg6: memref<128x128xf32, #tpu.memory_space<vmem>>) attributes {dimension_semantics = [#tpu.dimension_semantics<parallel>], iteration_bounds = array<i64: 1>, scalar_prefetch = 0 : i64, scratch_operands = 0 : i64, tpu.core_type = #tpu.core_type<tc>, window_params = [{transform_indices = @transform_0, window_bounds = array<i64: 128, 1024>}, {pipeline_mode = #tpu.pipeline_mode<synchronous>, transform_indices = @transform_1, window_bounds = array<i64: 1024, 128>}, {pipeline_mode = #tpu.pipeline_mode<synchronous>, transform_indices = @transform_2, window_bounds = array<i64: 1, 128>}, {pipeline_mode = #tpu.pipeline_mode<synchronous>, transform_indices = @transform_3, window_bounds = array<i64: 128, 128>}, {pipeline_mode = #tpu.pipeline_mode<synchronous>, transform_indices = @transform_4, window_bounds = array<i64: 1, 128>}, {transform_indices = @transform_5, window_bounds = array<i64: 128, 128>}]} {
    %c0 = arith.constant 0 : index
    %c0_0 = arith.constant 0 : index
    %0 = vector.load %arg1[%c0, %c0_0] : memref<128x1024xbf16, #tpu.memory_space<vmem>>, vector<128x1024xbf16>
    %c0_1 = arith.constant 0 : index
    %c0_2 = arith.constant 0 : index
    %1 = vector.load %arg2[%c0_1, %c0_2] : memref<1024x128xbf16, #tpu.memory_space<vmem>>, vector<1024x128xbf16>
    %cst = arith.constant dense<0.000000e+00> : vector<128x128xf32>
    %2 = tpu.matmul %0, %1, %cst {dimension_numbers = #tpu.dot_dimension_numbers<[1], [0], [0], [1], [0, 0, 1, 1], [], []>} : vector<128x1024xbf16>, vector<1024x128xbf16>, vector<128x128xf32> -> vector<128x128xf32>
    %c0_3 = arith.constant 0 : index
    %c0_4 = arith.constant 0 : index
    %3 = vector.load %arg3[%c0_3, %c0_4] : memref<1x128xf32, #tpu.memory_space<vmem>>, vector<1x128xf32>
    %4 = vector.broadcast %3 : vector<1x128xf32> to vector<128x128xf32>
    %5 = arith.addf %2, %4 : vector<128x128xf32>
    %cst_5 = arith.constant 0.000000e+00 : f32
    %6 = vector.broadcast %cst_5 : f32 to vector<128x128xf32>
    %7 = arith.maximumf %5, %6 : vector<128x128xf32>
    %8 = arith.truncf %7 : vector<128x128xf32> to vector<128x128xbf16>
    %c0_6 = arith.constant 0 : index
    %c0_7 = arith.constant 0 : index
    %9 = vector.load %arg4[%c0_6, %c0_7] : memref<128x128xbf16, #tpu.memory_space<vmem>>, vector<128x128xbf16>
    %cst_8 = arith.constant dense<0.000000e+00> : vector<128x128xf32>
    %10 = tpu.matmul %8, %9, %cst_8 {dimension_numbers = #tpu.dot_dimension_numbers<[1], [0], [0], [1], [0, 0, 1, 1], [], []>} : vector<128x128xbf16>, vector<128x128xbf16>, vector<128x128xf32> -> vector<128x128xf32>
    %c0_9 = arith.constant 0 : index
    %c0_10 = arith.constant 0 : index
    %11 = vector.load %arg5[%c0_9, %c0_10] : memref<1x128xf32, #tpu.memory_space<vmem>>, vector<1x128xf32>
    %12 = vector.broadcast %11 : vector<1x128xf32> to vector<128x128xf32>
    %13 = arith.addf %10, %12 : vector<128x128xf32>
    %c0_11 = arith.constant 0 : index
    %c0_12 = arith.constant 0 : index
    %14 = vector.load %arg6[%c0_11, %c0_12] : memref<128x128xf32, #tpu.memory_space<vmem>>, vector<128x128xf32>
    tpu.vector_store %arg6[%c0_11, %c0_12], %13 {strides = array<i32>} : memref<128x128xf32, #tpu.memory_space<vmem>>, vector<128x128xf32>,
    return
  }
  func.func @transform_0(%arg0: i32) -> (i32, i32) {
    %c0_i32 = arith.constant 0 : i32
    %c0_i32_0 = arith.constant 0 : i32
    return %arg0, %c0_i32 : i32, i32
  }
  func.func @transform_1(%arg0: i32) -> (i32, i32) {
    %c0_i32 = arith.constant 0 : i32
    %c0_i32_0 = arith.constant 0 : i32
    %c0_i32_1 = arith.constant 0 : i32
    return %c0_i32, %c0_i32_0 : i32, i32
  }
  func.func @transform_2(%arg0: i32) -> (i32, i32) {
    %c0_i32 = arith.constant 0 : i32
    %c0_i32_0 = arith.constant 0 : i32
    %c0_i32_1 = arith.constant 0 : i32
    return %c0_i32, %c0_i32_0 : i32, i32
  }
  func.func @transform_3(%arg0: i32) -> (i32, i32) {
    %c0_i32 = arith.constant 0 : i32
    %c0_i32_0 = arith.constant 0 : i32
    %c0_i32_1 = arith.constant 0 : i32
    return %c0_i32, %c0_i32_0 : i32, i32
  }
  func.func @transform_4(%arg0: i32) -> (i32, i32) {
    %c0_i32 = arith.constant 0 : i32
    %c0_i32_0 = arith.constant 0 : i32
    %c0_i32_1 = arith.constant 0 : i32
    return %c0_i32, %c0_i32_0 : i32, i32
  }
  func.func @transform_5(%arg0: i32) -> (i32, i32) {
    %c0_i32 = arith.constant 0 : i32
    %c0_i32_0 = arith.constant 0 : i32
    return %arg0, %c0_i32 : i32, i32
  }
}

</mosaic_0001>

<llo_original>
// kernel: tpu_custom_call.1
$region0: #{tpu_custom_call.1}
  #allocation0 [shape = 'u32[]', space=smem, size = 0x4, offset = 0x4, fixed_abs, tag = 'smem constant byte address 0x4 - core index']
  #allocation1 [shape = 'u32[144,128]{1,0:T(1,128)}', space=vmem, size = 0x12000, scoped, tag = 'internal scratch']
  %s0 = inlined_call_operand.hbm [shape: bf16[128,1024], index: 0, kind: input, shape index: {}]
  %s1 = inlined_call_operand.hbm [shape: bf16[1024,128], index: 1, kind: input, shape index: {}]
  %s2 = inlined_call_operand.vmem [shape: f32[1,128], index: 2, kind: input, shape index: {}]
  %s3 = inlined_call_operand.hbm [shape: bf16[128,128], index: 3, kind: input, shape index: {}]
  %s4 = inlined_call_operand.vmem [shape: f32[1,128], index: 4, kind: input, shape index: {}]
  %s5 = inlined_call_operand.hbm [shape: f32[128,128], index: 5, kind: output, shape index: {}]
  %s6 = sld [smem:[#allocation0]]
  $region42: #{tpu_custom_call.1} parent=0
    _
  %s8 = ssub.s32 1, %s6
  %s9 = scalar_select 0, %s8, %s6
  $region1: #{tpu_custom_call.1} parent=0
    #allocation2 [shape = 'u8[262144]{0}', space=vmem, size = 0x40000, scoped, tag = 'input window, operand 0, single buffered']
    #allocation3 [shape = 's32[1]{0}', space=sflag, size = 0x4, scoped, tag = 'scoped memory for tpu_custom_call.1']
    #allocation4 [shape = 's32[1]{0}', space=sflag, size = 0x4, scoped, tag = 'scoped memory for tpu_custom_call.1']
    #allocation5 [shape = 'u8[262144]{0}', space=vmem, size = 0x40000, scoped, tag = 'input window, operand 1, single buffered']
    #allocation6 [shape = 's32[1]{0}', space=sflag, size = 0x4, scoped, tag = 'scoped memory for tpu_custom_call.1']
    #allocation7 [shape = 'u8[32768]{0}', space=vmem, size = 0x8000, scoped, tag = 'input window, operand 3, single buffered']
    #allocation8 [shape = 'u8[65536]{0}', space=vmem, size = 0x10000, scoped, tag = 'output window, operand 0, single buffered']
    %10 = vsyncpa [#allocation3], 0
    %11 = vsyncpa [#allocation6], 0
    %12 = vsyncpa [#allocation4], 0
    // Predicated region
    $region2: #{tpu_custom_call.1} parent=1 // pred_check
      _
    $region3: #{tpu_custom_call.1} parent=1 // pred_check_branch
      %14 = sbr.rel (0) target = $region5
    $region4: #{tpu_custom_call.1} parent=1 // pred_region
      %s16 = ssub.s32 8192, 8192
      %17 = vsyncadd [#allocation3], %s16
      %s18 = sshll.u32 [#allocation2], 4
      %s19 = int_to_ptr.vmem [resolvable:$true] %s18
      %24 = dma.hbm_to_vmem [thread:$0]  %s0, 8192, %s19, [#allocation3], 512, 512, 32
    $region5: #{tpu_custom_call.1} parent=1 // pred_fallthru
      _
    // Predicated region
    $region6: #{tpu_custom_call.1} parent=1 // pred_check
      _
    $region7: #{tpu_custom_call.1} parent=1 // pred_check_branch
      %26 = sbr.rel (0) target = $region9
    $region8: #{tpu_custom_call.1} parent=1 // pred_region
      %s28 = ssub.s32 8192, 8192
      %29 = vsyncadd [#allocation6], %s28
      %s30 = sshll.u32 [#allocation5], 4
      %s31 = int_to_ptr.vmem [resolvable:$true] %s30
      %36 = dma.hbm_to_vmem [thread:$0]  %s1, 8192, %s31, [#allocation6], 64, 64, 4
    $region9: #{tpu_custom_call.1} parent=1 // pred_fallthru
      _
    // Predicated region
    $region10: #{tpu_custom_call.1} parent=1 // pred_check
      _
    $region11: #{tpu_custom_call.1} parent=1 // pred_check_branch
      %38 = sbr.rel (0) target = $region13
    $region12: #{tpu_custom_call.1} parent=1 // pred_region
      _
    $region13: #{tpu_custom_call.1} parent=1 // pred_fallthru
      _
    // Predicated region
    $region14: #{tpu_custom_call.1} parent=1 // pred_check
      _
    $region15: #{tpu_custom_call.1} parent=1 // pred_check_branch
      %40 = sbr.rel (0) target = $region17
    $region16: #{tpu_custom_call.1} parent=1 // pred_region
      %s42 = ssub.s32 1024, 1024
      %43 = vsyncadd [#allocation6], %s42
      %s44 = sshll.u32 [#allocation7], 4
      %s45 = int_to_ptr.vmem [resolvable:$true] %s44
      %50 = dma.hbm_to_vmem [thread:$0]  %s3, 1024, %s45, [#allocation6], 64, 64, 4
    $region17: #{tpu_custom_call.1} parent=1 // pred_fallthru
      _
    // Predicated region
    $region18: #{tpu_custom_call.1} parent=1 // pred_check
      _
    $region19: #{tpu_custom_call.1} parent=1 // pred_check_branch
      %52 = sbr.rel (0) target = $region21
    $region20: #{tpu_custom_call.1} parent=1 // pred_region
      _
    $region21: #{tpu_custom_call.1} parent=1 // pred_fallthru
      _
    // Predicated region
    $region22: #{tpu_custom_call.1} parent=1 // pred_check
      _
    $region23: #{tpu_custom_call.1} parent=1 // pred_check_branch
      %54 = sbr.rel (0) target = $region25
    $region24: #{tpu_custom_call.1} parent=1 // pred_region
      %55 = dma.done [#allocation3], 8192
    $region25: #{tpu_custom_call.1} parent=1 // pred_fallthru
      _
    // Predicated region
    $region26: #{tpu_custom_call.1} parent=1 // pred_check
      _
    $region27: #{tpu_custom_call.1} parent=1 // pred_check_branch
      %57 = sbr.rel (0) target = $region29
    $region28: #{tpu_custom_call.1} parent=1 // pred_region
      %58 = dma.done [#allocation6], 8192
    $region29: #{tpu_custom_call.1} parent=1 // pred_fallthru
      _
    // Predicated region
    $region30: #{tpu_custom_call.1} parent=1 // pred_check
      _
    $region31: #{tpu_custom_call.1} parent=1 // pred_check_branch
      %60 = sbr.rel (0) target = $region33
    $region32: #{tpu_custom_call.1} parent=1 // pred_region
      %61 = dma.done [#allocation6], 1024
    $region33: #{tpu_custom_call.1} parent=1 // pred_fallthru
      _
    %v63 = vld [vmem:[#allocation2] sm:$0xff]
    %v64 = vld [vmem:[#allocation2 + $0x8] sm:$0xff]
    %v65 = vld [vmem:[#allocation2 + $0x10] sm:$0xff]
    %v66 = vld [vmem:[#allocation2 + $0x18] sm:$0xff]
    %v67 = vld [vmem:[#allocation2 + $0x20] sm:$0xff]
    %v68 = vld [vmem:[#allocation2 + $0x28] sm:$0xff]
    %v69 = vld [vmem:[#allocation2 + $0x30] sm:$0xff]
    %v70 = vld [vmem:[#allocation2 + $0x38] sm:$0xff]
    %v71 = vld [vmem:[#allocation2 + $0x40] sm:$0xff]
    %v72 = vld [vmem:[#allocation2 + $0x48] sm:$0xff]
    %v73 = vld [vmem:[#allocation2 + $0x50] sm:$0xff]
    %v74 = vld [vmem:[#allocation2 + $0x58] sm:$0xff]
    %v75 = vld [vmem:[#allocation2 + $0x60] sm:$0xff]
    %v76 = vld [vmem:[#allocation2 + $0x68] sm:$0xff]
    %v77 = vld [vmem:[#allocation2 + $0x70] sm:$0xff]
    %v78 = vld [vmem:[#allocation2 + $0x78] sm:$0xff]
    %v79 = vld [vmem:[#allocation2 + $0x80] sm:$0xff]
    %v80 = vld [vmem:[#allocation2 + $0x88] sm:$0xff]
    %v81 = vld [vmem:[#allocation2 + $0x90] sm:$0xff]
    %v82 = vld [vmem:[#allocation2 + $0x98] sm:$0xff]
    %v83 = vld [vmem:[#allocation2 + $0xa0] sm:$0xff]
    %v84 = vld [vmem:[#allocation2 + $0xa8] sm:$0xff]
    %v85 = vld [vmem:[#allocation2 + $0xb0] sm:$0xff]
    %v86 = vld [vmem:[#allocation2 + $0xb8] sm:$0xff]
    %v87 = vld [vmem:[#allocation2 + $0xc0] sm:$0xff]
    %v88 = vld [vmem:[#allocation2 + $0xc8] sm:$0xff]
    %v89 = vld [vmem:[#allocation2 + $0xd0] sm:$0xff]
    %v90 = vld [vmem:[#allocation2 + $0xd8] sm:$0xff]
    %v91 = vld [vmem:[#allocation2 + $0xe0] sm:$0xff]
    %v92 = vld [vmem:[#allocation2 + $0xe8] sm:$0xff]
    %v93 = vld [vmem:[#allocation2 + $0xf0] sm:$0xff]
    %v94 = vld [vmem:[#allocation2 + $0xf8] sm:$0xff]
    %v95 = vld [vmem:[#allocation2 + $0x100] sm:$0xff]
    %v96 = vld [vmem:[#allocation2 + $0x108] sm:$0xff]
    %v97 = vld [vmem:[#allocation2 + $0x110] sm:$0xff]
    %v98 = vld [vmem:[#allocation2 + $0x118] sm:$0xff]
    %v99 = vld [vmem:[#allocation2 + $0x120] sm:$0xff]
    %v100 = vld [vmem:[#allocation2 + $0x128] sm:$0xff]
    %v101 = vld [vmem:[#allocation2 + $0x130] sm:$0xff]
    %v102 = vld [vmem:[#allocation2 + $0x138] sm:$0xff]
    %v103 = vld [vmem:[#allocation2 + $0x140] sm:$0xff]
    %v104 = vld [vmem:[#allocation2 + $0x148] sm:$0xff]
    %v105 = vld [vmem:[#allocation2 + $0x150] sm:$0xff]
    %v106 = vld [vmem:[#allocation2 + $0x158] sm:$0xff]
    %v107 = vld [vmem:[#allocation2 + $0x160] sm:$0xff]
    %v108 = vld [vmem:[#allocation2 + $0x168] sm:$0xff]
    %v109 = vld [vmem:[#allocation2 + $0x170] sm:$0xff]
    %v110 = vld [vmem:[#allocation2 + $0x178] sm:$0xff]
    %v111 = vld [vmem:[#allocation2 + $0x180] sm:$0xff]
    %v112 = vld [vmem:[#allocation2 + $0x188] sm:$0xff]
    %v113 = vld [vmem:[#allocation2 + $0x190] sm:$0xff]
    %v114 = vld [vmem:[#allocation2 + $0x198] sm:$0xff]
    %v115 = vld [vmem:[#allocation2 + $0x1a0] sm:$0xff]
    %v116 = vld [vmem:[#allocation2 + $0x1a8] sm:$0xff]
    %v117 = vld [vmem:[#allocation2 + $0x1b0] sm:$0xff]
    %v118 = vld [vmem:[#allocation2 + $0x1b8] sm:$0xff]
    %v119 = vld [vmem:[#allocation2 + $0x1c0] sm:$0xff]
    %v120 = vld [vmem:[#allocation2 + $0x1c8] sm:$0xff]
    %v121 = vld [vmem:[#allocation2 + $0x1d0] sm:$0xff]
    %v122 = vld [vmem:[#allocation2 + $0x1d8] sm:$0xff]
    %v123 = vld [vmem:[#allocation2 + $0x1e0] sm:$0xff]
    %v124 = vld [vmem:[#allocation2 + $0x1e8] sm:$0xff]
    %v125 = vld [vmem:[#allocation2 + $0x1f0] sm:$0xff]
    %v126 = vld [vmem:[#allocation2 + $0x1f8] sm:$0xff]
    %v127 = vld [vmem:[#allocation5] sm:$0xf]
    %v128 = vld [vmem:[#allocation5 + $0x4] sm:$0xf]
    %v129 = vld [vmem:[#allocation5 + $0x8] sm:$0xf]
    %v130 = vld [vmem:[#allocation5 + $0xc] sm:$0xf]
    %v131 = vld [vmem:[#allocation5 + $0x10] sm:$0xf]
    %v132 = vld [vmem:[#allocation5 + $0x14] sm:$0xf]
    %v133 = vld [vmem:[#allocation5 + $0x18] sm:$0xf]
    %v134 = vld [vmem:[#allocation5 + $0x1c] sm:$0xf]
    %v135 = vld [vmem:[#allocation5 + $0x20] sm:$0xf]
    %v136 = vld [vmem:[#allocation5 + $0x24] sm:$0xf]
    %v137 = vld [vmem:[#allocation5 + $0x28] sm:$0xf]
    %v138 = vld [vmem:[#allocation5 + $0x2c] sm:$0xf]
    %v139 = vld [vmem:[#allocation5 + $0x30] sm:$0xf]
    %v140 = vld [vmem:[#allocation5 + $0x34] sm:$0xf]
    %v141 = vld [vmem:[#allocation5 + $0x38] sm:$0xf]
    %v142 = vld [vmem:[#allocation5 + $0x3c] sm:$0xf]
    %v143 = vld [vmem:[#allocation5 + $0x40] sm:$0xf]
    %v144 = vld [vmem:[#allocation5 + $0x44] sm:$0xf]
    %v145 = vld [vmem:[#allocation5 + $0x48] sm:$0xf]
    %v146 = vld [vmem:[#allocation5 + $0x4c] sm:$0xf]
    %v147 = vld [vmem:[#allocation5 + $0x50] sm:$0xf]
    %v148 = vld [vmem:[#allocation5 + $0x54] sm:$0xf]
    %v149 = vld [vmem:[#allocation5 + $0x58] sm:$0xf]
    %v150 = vld [vmem:[#allocation5 + $0x5c] sm:$0xf]
    %v151 = vld [vmem:[#allocation5 + $0x60] sm:$0xf]
    %v152 = vld [vmem:[#allocation5 + $0x64] sm:$0xf]
    %v153 = vld [vmem:[#allocation5 + $0x68] sm:$0xf]
    %v154 = vld [vmem:[#allocation5 + $0x6c] sm:$0xf]
    %v155 = vld [vmem:[#allocation5 + $0x70] sm:$0xf]
    %v156 = vld [vmem:[#allocation5 + $0x74] sm:$0xf]
    %v157 = vld [vmem:[#allocation5 + $0x78] sm:$0xf]
    %v158 = vld [vmem:[#allocation5 + $0x7c] sm:$0xf]
    %v159 = vld [vmem:[#allocation5 + $0x80] sm:$0xf]
    %v160 = vld [vmem:[#allocation5 + $0x84] sm:$0xf]
    %v161 = vld [vmem:[#allocation5 + $0x88] sm:$0xf]
    %v162 = vld [vmem:[#allocation5 + $0x8c] sm:$0xf]
    %v163 = vld [vmem:[#allocation5 + $0x90] sm:$0xf]
    %v164 = vld [vmem:[#allocation5 + $0x94] sm:$0xf]
    %v165 = vld [vmem:[#allocation5 + $0x98] sm:$0xf]
    %v166 = vld [vmem:[#allocation5 + $0x9c] sm:$0xf]
    %v167 = vld [vmem:[#allocation5 + $0xa0] sm:$0xf]
    %v168 = vld [vmem:[#allocation5 + $0xa4] sm:$0xf]
    %v169 = vld [vmem:[#allocation5 + $0xa8] sm:$0xf]
    %v170 = vld [vmem:[#allocation5 + $0xac] sm:$0xf]
    %v171 = vld [vmem:[#allocation5 + $0xb0] sm:$0xf]
    %v172 = vld [vmem:[#allocation5 + $0xb4] sm:$0xf]
    %v173 = vld [vmem:[#allocation5 + $0xb8] sm:$0xf]
    %v174 = vld [vmem:[#allocation5 + $0xbc] sm:$0xf]
    %v175 = vld [vmem:[#allocation5 + $0xc0] sm:$0xf]
    %v176 = vld [vmem:[#allocation5 + $0xc4] sm:$0xf]
    %v177 = vld [vmem:[#allocation5 + $0xc8] sm:$0xf]
    %v178 = vld [vmem:[#allocation5 + $0xcc] sm:$0xf]
    %v179 = vld [vmem:[#allocation5 + $0xd0] sm:$0xf]
    %v180 = vld [vmem:[#allocation5 + $0xd4] sm:$0xf]
    %v181 = vld [vmem:[#allocation5 + $0xd8] sm:$0xf]
    %v182 = vld [vmem:[#allocation5 + $0xdc] sm:$0xf]
    %v183 = vld [vmem:[#allocation5 + $0xe0] sm:$0xf]
    %v184 = vld [vmem:[#allocation5 + $0xe4] sm:$0xf]
    %v185 = vld [vmem:[#allocation5 + $0xe8] sm:$0xf]
    %v186 = vld [vmem:[#allocation5 + $0xec] sm:$0xf]
    %v187 = vld [vmem:[#allocation5 + $0xf0] sm:$0xf]
    %v188 = vld [vmem:[#allocation5 + $0xf4] sm:$0xf]
    %v189 = vld [vmem:[#allocation5 + $0xf8] sm:$0xf]
    %v190 = vld [vmem:[#allocation5 + $0xfc] sm:$0xf]
    %v191 = vld [vmem:[#allocation5 + $0x100] sm:$0xf]
    %v192 = vld [vmem:[#allocation5 + $0x104] sm:$0xf]
    %v193 = vld [vmem:[#allocation5 + $0x108] sm:$0xf]
    %v194 = vld [vmem:[#allocation5 + $0x10c] sm:$0xf]
    %v195 = vld [vmem:[#allocation5 + $0x110] sm:$0xf]
    %v196 = vld [vmem:[#allocation5 + $0x114] sm:$0xf]
    %v197 = vld [vmem:[#allocation5 + $0x118] sm:$0xf]
    %v198 = vld [vmem:[#allocation5 + $0x11c] sm:$0xf]
    %v199 = vld [vmem:[#allocation5 + $0x120] sm:$0xf]
    %v200 = vld [vmem:[#allocation5 + $0x124] sm:$0xf]
    %v201 = vld [vmem:[#allocation5 + $0x128] sm:$0xf]
    %v202 = vld [vmem:[#allocation5 + $0x12c] sm:$0xf]
    %v203 = vld [vmem:[#allocation5 + $0x130] sm:$0xf]
    %v204 = vld [vmem:[#allocation5 + $0x134] sm:$0xf]
    %v205 = vld [vmem:[#allocation5 + $0x138] sm:$0xf]
    %v206 = vld [vmem:[#allocation5 + $0x13c] sm:$0xf]
    %v207 = vld [vmem:[#allocation5 + $0x140] sm:$0xf]
    %v208 = vld [vmem:[#allocation5 + $0x144] sm:$0xf]
    %v209 = vld [vmem:[#allocation5 + $0x148] sm:$0xf]
    %v210 = vld [vmem:[#allocation5 + $0x14c] sm:$0xf]
    %v211 = vld [vmem:[#allocation5 + $0x150] sm:$0xf]
    %v212 = vld [vmem:[#allocation5 + $0x154] sm:$0xf]
    %v213 = vld [vmem:[#allocation5 + $0x158] sm:$0xf]
    %v214 = vld [vmem:[#allocation5 + $0x15c] sm:$0xf]
    %v215 = vld [vmem:[#allocation5 + $0x160] sm:$0xf]
    %v216 = vld [vmem:[#allocation5 + $0x164] sm:$0xf]
    %v217 = vld [vmem:[#allocation5 + $0x168] sm:$0xf]
    %v218 = vld [vmem:[#allocation5 + $0x16c] sm:$0xf]
    %v219 = vld [vmem:[#allocation5 + $0x170] sm:$0xf]
    %v220 = vld [vmem:[#allocation5 + $0x174] sm:$0xf]
    %v221 = vld [vmem:[#allocation5 + $0x178] sm:$0xf]
    %v222 = vld [vmem:[#allocation5 + $0x17c] sm:$0xf]
    %v223 = vld [vmem:[#allocation5 + $0x180] sm:$0xf]
    %v224 = vld [vmem:[#allocation5 + $0x184] sm:$0xf]
    %v225 = vld [vmem:[#allocation5 + $0x188] sm:$0xf]
    %v226 = vld [vmem:[#allocation5 + $0x18c] sm:$0xf]
    %v227 = vld [vmem:[#allocation5 + $0x190] sm:$0xf]
    %v228 = vld [vmem:[#allocation5 + $0x194] sm:$0xf]
    %v229 = vld [vmem:[#allocation5 + $0x198] sm:$0xf]
    %v230 = vld [vmem:[#allocation5 + $0x19c] sm:$0xf]
    %v231 = vld [vmem:[#allocation5 + $0x1a0] sm:$0xf]
    %v232 = vld [vmem:[#allocation5 + $0x1a4] sm:$0xf]
    %v233 = vld [vmem:[#allocation5 + $0x1a8] sm:$0xf]
    %v234 = vld [vmem:[#allocation5 + $0x1ac] sm:$0xf]
    %v235 = vld [vmem:[#allocation5 + $0x1b0] sm:$0xf]
    %v236 = vld [vmem:[#allocation5 + $0x1b4] sm:$0xf]
    %v237 = vld [vmem:[#allocation5 + $0x1b8] sm:$0xf]
    %v238 = vld [vmem:[#allocation5 + $0x1bc] sm:$0xf]
    %v239 = vld [vmem:[#allocation5 + $0x1c0] sm:$0xf]
    %v240 = vld [vmem:[#allocation5 + $0x1c4] sm:$0xf]
    %v241 = vld [vmem:[#allocation5 + $0x1c8] sm:$0xf]
    %v242 = vld [vmem:[#allocation5 + $0x1cc] sm:$0xf]
    %v243 = vld [vmem:[#allocation5 + $0x1d0] sm:$0xf]
    %v244 = vld [vmem:[#allocation5 + $0x1d4] sm:$0xf]
    %v245 = vld [vmem:[#allocation5 + $0x1d8] sm:$0xf]
    %v246 = vld [vmem:[#allocation5 + $0x1dc] sm:$0xf]
    %v247 = vld [vmem:[#allocation5 + $0x1e0] sm:$0xf]
    %v248 = vld [vmem:[#allocation5 + $0x1e4] sm:$0xf]
    %v249 = vld [vmem:[#allocation5 + $0x1e8] sm:$0xf]
    %v250 = vld [vmem:[#allocation5 + $0x1ec] sm:$0xf]
    %v251 = vld [vmem:[#allocation5 + $0x1f0] sm:$0xf]
    %v252 = vld [vmem:[#allocation5 + $0x1f4] sm:$0xf]
    %v253 = vld [vmem:[#allocation5 + $0x1f8] sm:$0xf]
    %v254 = vld [vmem:[#allocation5 + $0x1fc] sm:$0xf]
    %v255 = vld [vmem:[%s2] sm:$0x1]
    %v257 = vlaneseq
    %v258 = vshrl.u32 %v257, 7
    %v259 = vsub.s32 0, %v258
    %v260 = vrot.slane %v255, %v259
    %v326 = vunpack.c.l.b16 %v63
    %v327 = vunpack.c.h.b16 %v63
    %v328 = vunpack.c.l.b16 %v64
    %v329 = vunpack.c.h.b16 %v64
    %v330 = vunpack.c.l.b16 %v65
    %v331 = vunpack.c.h.b16 %v65
    %v332 = vunpack.c.l.b16 %v66
    %v333 = vunpack.c.h.b16 %v66
    %v334 = vunpack.c.l.b16 %v67
    %v335 = vunpack.c.h.b16 %v67
    %v336 = vunpack.c.l.b16 %v68
    %v337 = vunpack.c.h.b16 %v68
    %v338 = vunpack.c.l.b16 %v69
    %v339 = vunpack.c.h.b16 %v69
    %v340 = vunpack.c.l.b16 %v70
    %v341 = vunpack.c.h.b16 %v70
    %v342 = vunpack.c.l.b16 %v71
    %v343 = vunpack.c.h.b16 %v71
    %v344 = vunpack.c.l.b16 %v72
    %v345 = vunpack.c.h.b16 %v72
    %v346 = vunpack.c.l.b16 %v73
    %v347 = vunpack.c.h.b16 %v73
    %v348 = vunpack.c.l.b16 %v74
    %v349 = vunpack.c.h.b16 %v74
    %v350 = vunpack.c.l.b16 %v75
    %v351 = vunpack.c.h.b16 %v75
    %v352 = vunpack.c.l.b16 %v76
    %v353 = vunpack.c.h.b16 %v76
    %v354 = vunpack.c.l.b16 %v77
    %v355 = vunpack.c.h.b16 %v77
    %v356 = vunpack.c.l.b16 %v78
    %v357 = vunpack.c.h.b16 %v78
    %v358 = vunpack.c.l.b16 %v79
    %v359 = vunpack.c.h.b16 %v79
    %v360 = vunpack.c.l.b16 %v80
    %v361 = vunpack.c.h.b16 %v80
    %v362 = vunpack.c.l.b16 %v81
    %v363 = vunpack.c.h.b16 %v81
    %v364 = vunpack.c.l.b16 %v82
    %v365 = vunpack.c.h.b16 %v82
    %v366 = vunpack.c.l.b16 %v83
    %v367 = vunpack.c.h.b16 %v83
    %v368 = vunpack.c.l.b16 %v84
    %v369 = vunpack.c.h.b16 %v84
    %v370 = vunpack.c.l.b16 %v85
    %v371 = vunpack.c.h.b16 %v85
    %v372 = vunpack.c.l.b16 %v86
    %v373 = vunpack.c.h.b16 %v86
    %v374 = vunpack.c.l.b16 %v87
    %v375 = vunpack.c.h.b16 %v87
    %v376 = vunpack.c.l.b16 %v88
    %v377 = vunpack.c.h.b16 %v88
    %v378 = vunpack.c.l.b16 %v89
    %v379 = vunpack.c.h.b16 %v89
    %v380 = vunpack.c.l.b16 %v90
    %v381 = vunpack.c.h.b16 %v90
    %v382 = vunpack.c.l.b16 %v91
    %v383 = vunpack.c.h.b16 %v91
    %v384 = vunpack.c.l.b16 %v92
    %v385 = vunpack.c.h.b16 %v92
    %v386 = vunpack.c.l.b16 %v93
    %v387 = vunpack.c.h.b16 %v93
    %v388 = vunpack.c.l.b16 %v94
    %v389 = vunpack.c.h.b16 %v94
    %v390 = vunpack.c.l.b16 %v95
    %v391 = vunpack.c.h.b16 %v95
    %v392 = vunpack.c.l.b16 %v96
    %v393 = vunpack.c.h.b16 %v96
    %v394 = vunpack.c.l.b16 %v97
    %v395 = vunpack.c.h.b16 %v97
    %v396 = vunpack.c.l.b16 %v98
    %v397 = vunpack.c.h.b16 %v98
    %v398 = vunpack.c.l.b16 %v99
    %v399 = vunpack.c.h.b16 %v99
    %v400 = vunpack.c.l.b16 %v100
    %v401 = vunpack.c.h.b16 %v100
    %v402 = vunpack.c.l.b16 %v101
    %v403 = vunpack.c.h.b16 %v101
    %v404 = vunpack.c.l.b16 %v102
    %v405 = vunpack.c.h.b16 %v102
    %v406 = vunpack.c.l.b16 %v103
    %v407 = vunpack.c.h.b16 %v103
    %v408 = vunpack.c.l.b16 %v104
    %v409 = vunpack.c.h.b16 %v104
    %v410 = vunpack.c.l.b16 %v105
    %v411 = vunpack.c.h.b16 %v105
    %v412 = vunpack.c.l.b16 %v106
    %v413 = vunpack.c.h.b16 %v106
    %v414 = vunpack.c.l.b16 %v107
    %v415 = vunpack.c.h.b16 %v107
    %v416 = vunpack.c.l.b16 %v108
    %v417 = vunpack.c.h.b16 %v108
    %v418 = vunpack.c.l.b16 %v109
    %v419 = vunpack.c.h.b16 %v109
    %v420 = vunpack.c.l.b16 %v110
    %v421 = vunpack.c.h.b16 %v110
    %v422 = vunpack.c.l.b16 %v111
    %v423 = vunpack.c.h.b16 %v111
    %v424 = vunpack.c.l.b16 %v112
    %v425 = vunpack.c.h.b16 %v112
    %v426 = vunpack.c.l.b16 %v113
    %v427 = vunpack.c.h.b16 %v113
    %v428 = vunpack.c.l.b16 %v114
    %v429 = vunpack.c.h.b16 %v114
    %v430 = vunpack.c.l.b16 %v115
    %v431 = vunpack.c.h.b16 %v115
    %v432 = vunpack.c.l.b16 %v116
    %v433 = vunpack.c.h.b16 %v116
    %v434 = vunpack.c.l.b16 %v117
    %v435 = vunpack.c.h.b16 %v117
    %v436 = vunpack.c.l.b16 %v118
    %v437 = vunpack.c.h.b16 %v118
    %v438 = vunpack.c.l.b16 %v119
    %v439 = vunpack.c.h.b16 %v119
    %v440 = vunpack.c.l.b16 %v120
    %v441 = vunpack.c.h.b16 %v120
    %v442 = vunpack.c.l.b16 %v121
    %v443 = vunpack.c.h.b16 %v121
    %v444 = vunpack.c.l.b16 %v122
    %v445 = vunpack.c.h.b16 %v122
    %v446 = vunpack.c.l.b16 %v123
    %v447 = vunpack.c.h.b16 %v123
    %v448 = vunpack.c.l.b16 %v124
    %v449 = vunpack.c.h.b16 %v124
    %v450 = vunpack.c.l.b16 %v125
    %v451 = vunpack.c.h.b16 %v125
    %v452 = vunpack.c.l.b16 %v126
    %v453 = vunpack.c.h.b16 %v126
    %v454 = vpack.c.b16 %v334, %v326
    %v455 = vpack.c.b16 %v335, %v327
    %v456 = vpack.c.b16 %v336, %v328
    %v457 = vpack.c.b16 %v337, %v329
    %v458 = vpack.c.b16 %v338, %v330
    %v459 = vpack.c.b16 %v339, %v331
    %v460 = vpack.c.b16 %v340, %v332
    %v461 = vpack.c.b16 %v341, %v333
    %v462 = vpack.c.b16 %v350, %v342
    %v463 = vpack.c.b16 %v351, %v343
    %v464 = vpack.c.b16 %v352, %v344
    %v465 = vpack.c.b16 %v353, %v345
    %v466 = vpack.c.b16 %v354, %v346
    %v467 = vpack.c.b16 %v355, %v347
    %v468 = vpack.c.b16 %v356, %v348
    %v469 = vpack.c.b16 %v357, %v349
    %v470 = vpack.c.b16 %v366, %v358
    %v471 = vpack.c.b16 %v367, %v359
    %v472 = vpack.c.b16 %v368, %v360
    %v473 = vpack.c.b16 %v369, %v361
    %v474 = vpack.c.b16 %v370, %v362
    %v475 = vpack.c.b16 %v371, %v363
    %v476 = vpack.c.b16 %v372, %v364
    %v477 = vpack.c.b16 %v373, %v365
    %v478 = vpack.c.b16 %v382, %v374
    %v479 = vpack.c.b16 %v383, %v375
    %v480 = vpack.c.b16 %v384, %v376
    %v481 = vpack.c.b16 %v385, %v377
    %v482 = vpack.c.b16 %v386, %v378
    %v483 = vpack.c.b16 %v387, %v379
    %v484 = vpack.c.b16 %v388, %v380
    %v485 = vpack.c.b16 %v389, %v381
    %v486 = vpack.c.b16 %v398, %v390
    %v487 = vpack.c.b16 %v399, %v391
    %v488 = vpack.c.b16 %v400, %v392
    %v489 = vpack.c.b16 %v401, %v393
    %v490 = vpack.c.b16 %v402, %v394
    %v491 = vpack.c.b16 %v403, %v395
    %v492 = vpack.c.b16 %v404, %v396
    %v493 = vpack.c.b16 %v405, %v397
    %v494 = vpack.c.b16 %v414, %v406
    %v495 = vpack.c.b16 %v415, %v407
    %v496 = vpack.c.b16 %v416, %v408
    %v497 = vpack.c.b16 %v417, %v409
    %v498 = vpack.c.b16 %v418, %v410
    %v499 = vpack.c.b16 %v419, %v411
    %v500 = vpack.c.b16 %v420, %v412
    %v501 = vpack.c.b16 %v421, %v413
    %v502 = vpack.c.b16 %v430, %v422
    %v503 = vpack.c.b16 %v431, %v423
    %v504 = vpack.c.b16 %v432, %v424
    %v505 = vpack.c.b16 %v433, %v425
    %v506 = vpack.c.b16 %v434, %v426
    %v507 = vpack.c.b16 %v435, %v427
    %v508 = vpack.c.b16 %v436, %v428
    %v509 = vpack.c.b16 %v437, %v429
    %v510 = vpack.c.b16 %v446, %v438
    %v511 = vpack.c.b16 %v447, %v439
    %v512 = vpack.c.b16 %v448, %v440
    %v513 = vpack.c.b16 %v449, %v441
    %v514 = vpack.c.b16 %v450, %v442
    %v515 = vpack.c.b16 %v451, %v443
    %v516 = vpack.c.b16 %v452, %v444
    %v517 = vpack.c.b16 %v453, %v445
    %v710 = vunpack.c.l.b16 %v127
    %v711 = vunpack.c.l.b16 %v128
    %v712 = vunpack.c.l.b16 %v129
    %v713 = vunpack.c.l.b16 %v130
    %v714 = vunpack.c.l.b16 %v131
    %v715 = vunpack.c.l.b16 %v132
    %v716 = vunpack.c.l.b16 %v133
    %v717 = vunpack.c.l.b16 %v134
    %v718 = vunpack.c.l.b16 %v135
    %v719 = vunpack.c.l.b16 %v136
    %v720 = vunpack.c.l.b16 %v137
    %v721 = vunpack.c.l.b16 %v138
    %v722 = vunpack.c.l.b16 %v139
    %v723 = vunpack.c.l.b16 %v140
    %v724 = vunpack.c.l.b16 %v141
    %v725 = vunpack.c.l.b16 %v142
    %v726 = vunpack.c.l.b16 %v143
    %v727 = vunpack.c.l.b16 %v144
    %v728 = vunpack.c.l.b16 %v145
    %v729 = vunpack.c.l.b16 %v146
    %v730 = vunpack.c.l.b16 %v147
    %v731 = vunpack.c.l.b16 %v148
    %v732 = vunpack.c.l.b16 %v149
    %v733 = vunpack.c.l.b16 %v150
    %v734 = vunpack.c.l.b16 %v151
    %v735 = vunpack.c.l.b16 %v152
    %v736 = vunpack.c.l.b16 %v153
    %v737 = vunpack.c.l.b16 %v154
    %v738 = vunpack.c.l.b16 %v155
    %v739 = vunpack.c.l.b16 %v156
    %v740 = vunpack.c.l.b16 %v157
    %v741 = vunpack.c.l.b16 %v158
    %v742 = vunpack.c.l.b16 %v159
    %v743 = vunpack.c.l.b16 %v160
    %v744 = vunpack.c.l.b16 %v161
    %v745 = vunpack.c.l.b16 %v162
    %v746 = vunpack.c.l.b16 %v163
    %v747 = vunpack.c.l.b16 %v164
    %v748 = vunpack.c.l.b16 %v165
    %v749 = vunpack.c.l.b16 %v166
    %v750 = vunpack.c.l.b16 %v167
    %v751 = vunpack.c.l.b16 %v168
    %v752 = vunpack.c.l.b16 %v169
    %v753 = vunpack.c.l.b16 %v170
    %v754 = vunpack.c.l.b16 %v171
    %v755 = vunpack.c.l.b16 %v172
    %v756 = vunpack.c.l.b16 %v173
    %v757 = vunpack.c.l.b16 %v174
    %v758 = vunpack.c.l.b16 %v175
    %v759 = vunpack.c.l.b16 %v176
    %v760 = vunpack.c.l.b16 %v177
    %v761 = vunpack.c.l.b16 %v178
    %v762 = vunpack.c.l.b16 %v179
    %v763 = vunpack.c.l.b16 %v180
    %v764 = vunpack.c.l.b16 %v181
    %v765 = vunpack.c.l.b16 %v182
    %v766 = vunpack.c.l.b16 %v183
    %v767 = vunpack.c.l.b16 %v184
    %v768 = vunpack.c.l.b16 %v185
    %v769 = vunpack.c.l.b16 %v186
    %v770 = vunpack.c.l.b16 %v187
    %v771 = vunpack.c.l.b16 %v188
    %v772 = vunpack.c.l.b16 %v189
    %v773 = vunpack.c.l.b16 %v190
    %v774 = vunpack.c.l.b16 %v191
    %v775 = vunpack.c.l.b16 %v192
    %v776 = vunpack.c.l.b16 %v193
    %v777 = vunpack.c.l.b16 %v194
    %v778 = vunpack.c.l.b16 %v195
    %v779 = vunpack.c.l.b16 %v196
    %v780 = vunpack.c.l.b16 %v197
    %v781 = vunpack.c.l.b16 %v198
    %v782 = vunpack.c.l.b16 %v199
    %v783 = vunpack.c.l.b16 %v200
    %v784 = vunpack.c.l.b16 %v201
    %v785 = vunpack.c.l.b16 %v202
    %v786 = vunpack.c.l.b16 %v203
    %v787 = vunpack.c.l.b16 %v204
    %v788 = vunpack.c.l.b16 %v205
    %v789 = vunpack.c.l.b16 %v206
    %v790 = vunpack.c.l.b16 %v207
    %v791 = vunpack.c.l.b16 %v208
    %v792 = vunpack.c.l.b16 %v209
    %v793 = vunpack.c.l.b16 %v210
    %v794 = vunpack.c.l.b16 %v211
    %v795 = vunpack.c.l.b16 %v212
    %v796 = vunpack.c.l.b16 %v213
    %v797 = vunpack.c.l.b16 %v214
    %v798 = vunpack.c.l.b16 %v215
    %v799 = vunpack.c.l.b16 %v216
    %v800 = vunpack.c.l.b16 %v217
    %v801 = vunpack.c.l.b16 %v218
    %v802 = vunpack.c.l.b16 %v219
    %v803 = vunpack.c.l.b16 %v220
    %v804 = vunpack.c.l.b16 %v221
    %v805 = vunpack.c.l.b16 %v222
    %v806 = vunpack.c.l.b16 %v223
    %v807 = vunpack.c.l.b16 %v224
    %v808 = vunpack.c.l.b16 %v225
    %v809 = vunpack.c.l.b16 %v226
    %v810 = vunpack.c.l.b16 %v227
    %v811 = vunpack.c.l.b16 %v228
    %v812 = vunpack.c.l.b16 %v229
    %v813 = vunpack.c.l.b16 %v230
    %v814 = vunpack.c.l.b16 %v231
    %v815 = vunpack.c.l.b16 %v232
    %v816 = vunpack.c.l.b16 %v233
    %v817 = vunpack.c.l.b16 %v234
    %v818 = vunpack.c.l.b16 %v235
    %v819 = vunpack.c.l.b16 %v236
    %v820 = vunpack.c.l.b16 %v237
    %v821 = vunpack.c.l.b16 %v238
    %v822 = vunpack.c.l.b16 %v239
    %v823 = vunpack.c.l.b16 %v240
    %v824 = vunpack.c.l.b16 %v241
    %v825 = vunpack.c.l.b16 %v242
    %v826 = vunpack.c.l.b16 %v243
    %v827 = vunpack.c.l.b16 %v244
    %v828 = vunpack.c.l.b16 %v245
    %v829 = vunpack.c.l.b16 %v246
    %v830 = vunpack.c.l.b16 %v247
    %v831 = vunpack.c.l.b16 %v248
    %v832 = vunpack.c.l.b16 %v249
    %v833 = vunpack.c.l.b16 %v250
    %v834 = vunpack.c.l.b16 %v251
    %v835 = vunpack.c.l.b16 %v252
    %v836 = vunpack.c.l.b16 %v253
    %v837 = vunpack.c.l.b16 %v254
    %v838 = vpack.c.b16 %v711, %v710
    %v839 = vpack.c.b16 %v713, %v712
    %v840 = vpack.c.b16 %v715, %v714
    %v841 = vpack.c.b16 %v717, %v716
    %v842 = vpack.c.b16 %v719, %v718
    %v843 = vpack.c.b16 %v721, %v720
    %v844 = vpack.c.b16 %v723, %v722
    %v845 = vpack.c.b16 %v725, %v724
    %v846 = vpack.c.b16 %v727, %v726
    %v847 = vpack.c.b16 %v729, %v728
    %v848 = vpack.c.b16 %v731, %v730
    %v849 = vpack.c.b16 %v733, %v732
    %v850 = vpack.c.b16 %v735, %v734
    %v851 = vpack.c.b16 %v737, %v736
    %v852 = vpack.c.b16 %v739, %v738
    %v853 = vpack.c.b16 %v741, %v740
    %v854 = vpack.c.b16 %v743, %v742
    %v855 = vpack.c.b16 %v745, %v744
    %v856 = vpack.c.b16 %v747, %v746
    %v857 = vpack.c.b16 %v749, %v748
    %v858 = vpack.c.b16 %v751, %v750
    %v859 = vpack.c.b16 %v753, %v752
    %v860 = vpack.c.b16 %v755, %v754
    %v861 = vpack.c.b16 %v757, %v756
    %v862 = vpack.c.b16 %v759, %v758
    %v863 = vpack.c.b16 %v761, %v760
    %v864 = vpack.c.b16 %v763, %v762
    %v865 = vpack.c.b16 %v765, %v764
    %v866 = vpack.c.b16 %v767, %v766
    %v867 = vpack.c.b16 %v769, %v768
    %v868 = vpack.c.b16 %v771, %v770
    %v869 = vpack.c.b16 %v773, %v772
    %v870 = vpack.c.b16 %v775, %v774
    %v871 = vpack.c.b16 %v777, %v776
    %v872 = vpack.c.b16 %v779, %v778
    %v873 = vpack.c.b16 %v781, %v780
    %v874 = vpack.c.b16 %v783, %v782
    %v875 = vpack.c.b16 %v785, %v784
    %v876 = vpack.c.b16 %v787, %v786
    %v877 = vpack.c.b16 %v789, %v788
    %v878 = vpack.c.b16 %v791, %v790
    %v879 = vpack.c.b16 %v793, %v792
    %v880 = vpack.c.b16 %v795, %v794
    %v881 = vpack.c.b16 %v797, %v796
    %v882 = vpack.c.b16 %v799, %v798
    %v883 = vpack.c.b16 %v801, %v800
    %v884 = vpack.c.b16 %v803, %v802
    %v885 = vpack.c.b16 %v805, %v804
    %v886 = vpack.c.b16 %v807, %v806
    %v887 = vpack.c.b16 %v809, %v808
    %v888 = vpack.c.b16 %v811, %v810
    %v889 = vpack.c.b16 %v813, %v812
    %v890 = vpack.c.b16 %v815, %v814
    %v891 = vpack.c.b16 %v817, %v816
    %v892 = vpack.c.b16 %v819, %v818
    %v893 = vpack.c.b16 %v821, %v820
    %v894 = vpack.c.b16 %v823, %v822
    %v895 = vpack.c.b16 %v825, %v824
    %v896 = vpack.c.b16 %v827, %v826
    %v897 = vpack.c.b16 %v829, %v828
    %v898 = vpack.c.b16 %v831, %v830
    %v899 = vpack.c.b16 %v833, %v832
    %v900 = vpack.c.b16 %v835, %v834
    %v901 = vpack.c.b16 %v837, %v836
    %966 = vmatprep.subr.bf16.mxu0 0
    %967 = vmatpush1.bf16.msra.mxu0 %v838
    %968 = vmatprep.subr.bf16.mxu0 0
    %969 = vmatpush1.bf16.msra.mxu0 %v839
    %970 = vmatprep.subr.bf16.mxu0 0
    %971 = vmatpush1.bf16.msra.mxu0 %v840
    %972 = vmatprep.subr.bf16.mxu0 0
    %973 = vmatpush1.bf16.msra.mxu0 %v841
    %974 = vmatprep.subr.bf16.mxu0 0
    %975 = vmatpush1.bf16.msra.mxu0 %v842
    %976 = vmatprep.subr.bf16.mxu0 0
    %977 = vmatpush1.bf16.msra.mxu0 %v843
    %978 = vmatprep.subr.bf16.mxu0 0
    %979 = vmatpush1.bf16.msra.mxu0 %v844
    %980 = vmatprep.subr.bf16.mxu0 0
    %981 = vmatpush1.bf16.msra.mxu0 %v845
    %982 = vmatprep.subr.bf16.mxu0 0
    %983 = vmatpush1.bf16.msra.mxu0 %v846
    %984 = vmatprep.subr.bf16.mxu0 0
    %985 = vmatpush1.bf16.msra.mxu0 %v847
    %986 = vmatprep.subr.bf16.mxu0 0
    %987 = vmatpush1.bf16.msra.mxu0 %v848
    %988 = vmatprep.subr.bf16.mxu0 0
    %989 = vmatpush1.bf16.msra.mxu0 %v849
    %990 = vmatprep.subr.bf16.mxu0 0
    %991 = vmatpush1.bf16.msra.mxu0 %v850
    %992 = vmatprep.subr.bf16.mxu0 0
    %993 = vmatpush1.bf16.msra.mxu0 %v851
    %994 = vmatprep.subr.bf16.mxu0 0
    %995 = vmatpush1.bf16.msra.mxu0 %v852
    %996 = vmatprep.subr.bf16.mxu0 0
    %997 = vmatpush1.bf16.msra.mxu0 %v853
    %998 = vmatprep.mubr.bf16.mxu0 %v455
    %999 = vmatmul.mubr.bf16.gmra.mrb[0].mxu0 %v454
    %v1000 = vpop.f32.mrb[0].mxu0
    %v1001 = vadd.f32 %v260, %v1000
    %v1002 = vpop.f32.mrb[0].mxu0
    %v1003 = vpop.f32.mrb[0].mxu0
    %v1004 = vadd.f32 %v260, %v1003
    %v1005 = vpop.f32.mrb[0].mxu0
    %1006 = vmatprep.mubr.bf16.mxu0 %v463
    %1007 = vmatmul.mubr.bf16.gmra.mrb[0].mxu0 %v462
    %v1008 = vpop.f32.mrb[0].mxu0
    %v1009 = vadd.f32 %v260, %v1008
    %v1010 = vpop.f32.mrb[0].mxu0
    %v1011 = vpop.f32.mrb[0].mxu0
    %v1012 = vadd.f32 %v260, %v1011
    %v1013 = vpop.f32.mrb[0].mxu0
    %1014 = vmatprep.mubr.bf16.mxu0 %v471
    %1015 = vmatmul.mubr.bf16.gmra.mrb[0].mxu0 %v470
    %v1016 = vpop.f32.mrb[0].mxu0
    %v1017 = vadd.f32 %v260, %v1016
    %v1018 = vpop.f32.mrb[0].mxu0
    %v1019 = vpop.f32.mrb[0].mxu0
    %v1020 = vadd.f32 %v260, %v1019
    %v1021 = vpop.f32.mrb[0].mxu0
    %1022 = vmatprep.mubr.bf16.mxu0 %v479
    %1023 = vmatmul.mubr.bf16.gmra.mrb[0].mxu0 %v478
    %v1024 = vpop.f32.mrb[0].mxu0
    %v1025 = vadd.f32 %v260, %v1024
    %v1026 = vpop.f32.mrb[0].mxu0
    %v1027 = vpop.f32.mrb[0].mxu0
    %v1028 = vadd.f32 %v260, %v1027
    %v1029 = vpop.f32.mrb[0].mxu0
    %1030 = vmatprep.mubr.bf16.mxu0 %v487
    %1031 = vmatmul.mubr.bf16.gmra.mrb[0].mxu0 %v486
    %v1032 = vpop.f32.mrb[0].mxu0
    %v1033 = vadd.f32 %v260, %v1032
    %v1034 = vpop.f32.mrb[0].mxu0
    %v1035 = vpop.f32.mrb[0].mxu0
    %v1036 = vadd.f32 %v260, %v1035
    %v1037 = vpop.f32.mrb[0].mxu0
    %1038 = vmatprep.mubr.bf16.mxu0 %v495
    %1039 = vmatmul.mubr.bf16.gmra.mrb[0].mxu0 %v494
    %v1040 = vpop.f32.mrb[0].mxu0
    %v1041 = vadd.f32 %v260, %v1040
    %v1042 = vpop.f32.mrb[0].mxu0
    %v1043 = vpop.f32.mrb[0].mxu0
    %v1044 = vadd.f32 %v260, %v1043
    %v1045 = vpop.f32.mrb[0].mxu0
    %1046 = vmatprep.mubr.bf16.mxu0 %v503
    %1047 = vmatmul.mubr.bf16.gmra.mrb[0].mxu0 %v502
    %v1048 = vpop.f32.mrb[0].mxu0
    %v1049 = vadd.f32 %v260, %v1048
    %v1050 = vpop.f32.mrb[0].mxu0
    %v1051 = vpop.f32.mrb[0].mxu0
    %v1052 = vadd.f32 %v260, %v1051
    %v1053 = vpop.f32.mrb[0].mxu0
    %1054 = vmatprep.mubr.bf16.mxu0 %v511
    %1055 = vmatmul.mubr.bf16.gmra.mrb[0].mxu0 %v510
    %v1056 = vpop.f32.mrb[0].mxu0
    %v1057 = vadd.f32 %v260, %v1056
    %v1058 = vpop.f32.mrb[0].mxu0
    %v1059 = vpop.f32.mrb[0].mxu0
    %v1060 = vadd.f32 %v260, %v1059
    %v1061 = vpop.f32.mrb[0].mxu0
    %1062 = vdwg.mxu0
    %1063 = vmatprep.subr.bf16.mxu0 0
    %1064 = vmatpush1.bf16.msra.mxu0 %v854
    %1065 = vmatprep.subr.bf16.mxu0 0
    %1066 = vmatpush1.bf16.msra.mxu0 %v855
    %1067 = vmatprep.subr.bf16.mxu0 0
    %1068 = vmatpush1.bf16.msra.mxu0 %v856
    %1069 = vmatprep.subr.bf16.mxu0 0
    %1070 = vmatpush1.bf16.msra.mxu0 %v857
    %1071 = vmatprep.subr.bf16.mxu0 0
    %1072 = vmatpush1.bf16.msra.mxu0 %v858
    %1073 = vmatprep.subr.bf16.mxu0 0
    %1074 = vmatpush1.bf16.msra.mxu0 %v859
    %1075 = vmatprep.subr.bf16.mxu0 0
    %1076 = vmatpush1.bf16.msra.mxu0 %v860
    %1077 = vmatprep.subr.bf16.mxu0 0
    %1078 = vmatpush1.bf16.msra.mxu0 %v861
    %1079 = vmatprep.subr.bf16.mxu0 0
    %1080 = vmatpush1.bf16.msra.mxu0 %v862
    %1081 = vmatprep.subr.bf16.mxu0 0
    %1082 = vmatpush1.bf16.msra.mxu0 %v863
    %1083 = vmatprep.subr.bf16.mxu0 0
    %1084 = vmatpush1.bf16.msra.mxu0 %v864
    %1085 = vmatprep.subr.bf16.mxu0 0
    %1086 = vmatpush1.bf16.msra.mxu0 %v865
    %1087 = vmatprep.subr.bf16.mxu0 0
    %1088 = vmatpush1.bf16.msra.mxu0 %v866
    %1089 = vmatprep.subr.bf16.mxu0 0
    %1090 = vmatpush1.bf16.msra.mxu0 %v867
    %1091 = vmatprep.subr.bf16.mxu0 0
    %1092 = vmatpush1.bf16.msra.mxu0 %v868
    %1093 = vmatprep.subr.bf16.mxu0 0
    %1094 = vmatpush1.bf16.msra.mxu0 %v869
    %1095 = vmatprep.mubr.bf16.mxu0 %v457
    %1096 = vmatmul.mubr.bf16.gmra.mrb[0].mxu0 %v456
    %v1097 = vpop.f32.mrb[0].mxu0
    %v1098 = vadd.f32 %v1001, %v1097
    %v1099 = vpop.f32.mrb[0].mxu0
    %v1100 = vpop.f32.mrb[0].mxu0
    %v1101 = vadd.f32 %v1004, %v1100
    %v1102 = vpop.f32.mrb[0].mxu0
    %1103 = vmatprep.mubr.bf16.mxu0 %v465
    %1104 = vmatmul.mubr.bf16.gmra.mrb[0].mxu0 %v464
    %v1105 = vpop.f32.mrb[0].mxu0
    %v1106 = vadd.f32 %v1009, %v1105
    %v1107 = vpop.f32.mrb[0].mxu0
    %v1108 = vpop.f32.mrb[0].mxu0
    %v1109 = vadd.f32 %v1012, %v1108
    %v1110 = vpop.f32.mrb[0].mxu0
    %1111 = vmatprep.mubr.bf16.mxu0 %v473
    %1112 = vmatmul.mubr.bf16.gmra.mrb[0].mxu0 %v472
    %v1113 = vpop.f32.mrb[0].mxu0
    %v1114 = vadd.f32 %v1017, %v1113
    %v1115 = vpop.f32.mrb[0].mxu0
    %v1116 = vpop.f32.mrb[0].mxu0
    %v1117 = vadd.f32 %v1020, %v1116
    %v1118 = vpop.f32.mrb[0].mxu0
    %1119 = vmatprep.mubr.bf16.mxu0 %v481
    %1120 = vmatmul.mubr.bf16.gmra.mrb[0].mxu0 %v480
    %v1121 = vpop.f32.mrb[0].mxu0
    %v1122 = vadd.f32 %v1025, %v1121
    %v1123 = vpop.f32.mrb[0].mxu0
    %v1124 = vpop.f32.mrb[0].mxu0
    %v1125 = vadd.f32 %v1028, %v1124
    %v1126 = vpop.f32.mrb[0].mxu0
    %1127 = vmatprep.mubr.bf16.mxu0 %v489
    %1128 = vmatmul.mubr.bf16.gmra.mrb[0].mxu0 %v488
    %v1129 = vpop.f32.mrb[0].mxu0
    %v1130 = vadd.f32 %v1033, %v1129
    %v1131 = vpop.f32.mrb[0].mxu0
    %v1132 = vpop.f32.mrb[0].mxu0
    %v1133 = vadd.f32 %v1036, %v1132
    %v1134 = vpop.f32.mrb[0].mxu0
    %1135 = vmatprep.mubr.bf16.mxu0 %v497
    %1136 = vmatmul.mubr.bf16.gmra.mrb[0].mxu0 %v496
    %v1137 = vpop.f32.mrb[0].mxu0
    %v1138 = vadd.f32 %v1041, %v1137
    %v1139 = vpop.f32.mrb[0].mxu0
    %v1140 = vpop.f32.mrb[0].mxu0
    %v1141 = vadd.f32 %v1044, %v1140
    %v1142 = vpop.f32.mrb[0].mxu0
    %1143 = vmatprep.mubr.bf16.mxu0 %v505
    %1144 = vmatmul.mubr.bf16.gmra.mrb[0].mxu0 %v504
    %v1145 = vpop.f32.mrb[0].mxu0
    %v1146 = vadd.f32 %v1049, %v1145
    %v1147 = vpop.f32.mrb[0].mxu0
    %v1148 = vpop.f32.mrb[0].mxu0
    %v1149 = vadd.f32 %v1052, %v1148
    %v1150 = vpop.f32.mrb[0].mxu0
    %1151 = vmatprep.mubr.bf16.mxu0 %v513
    %1152 = vmatmul.mubr.bf16.gmra.mrb[0].mxu0 %v512
    %v1153 = vpop.f32.mrb[0].mxu0
    %v1154 = vadd.f32 %v1057, %v1153
    %v1155 = vpop.f32.mrb[0].mxu0
    %v1156 = vpop.f32.mrb[0].mxu0
    %v1157 = vadd.f32 %v1060, %v1156
    %v1158 = vpop.f32.mrb[0].mxu0
    %1159 = vdwg.mxu0
    %1160 = vmatprep.subr.bf16.mxu0 0
    %1161 = vmatpush1.bf16.msra.mxu0 %v870
    %1162 = vmatprep.subr.bf16.mxu0 0
    %1163 = vmatpush1.bf16.msra.mxu0 %v871
    %1164 = vmatprep.subr.bf16.mxu0 0
    %1165 = vmatpush1.bf16.msra.mxu0 %v872
    %1166 = vmatprep.subr.bf16.mxu0 0
    %1167 = vmatpush1.bf16.msra.mxu0 %v873
    %1168 = vmatprep.subr.bf16.mxu0 0
    %1169 = vmatpush1.bf16.msra.mxu0 %v874
    %1170 = vmatprep.subr.bf16.mxu0 0
    %1171 = vmatpush1.bf16.msra.mxu0 %v875
    %1172 = vmatprep.subr.bf16.mxu0 0
    %1173 = vmatpush1.bf16.msra.mxu0 %v876
    %1174 = vmatprep.subr.bf16.mxu0 0
    %1175 = vmatpush1.bf16.msra.mxu0 %v877
    %1176 = vmatprep.subr.bf16.mxu0 0
    %1177 = vmatpush1.bf16.msra.mxu0 %v878
    %1178 = vmatprep.subr.bf16.mxu0 0
    %1179 = vmatpush1.bf16.msra.mxu0 %v879
    %1180 = vmatprep.subr.bf16.mxu0 0
    %1181 = vmatpush1.bf16.msra.mxu0 %v880
    %1182 = vmatprep.subr.bf16.mxu0 0
    %1183 = vmatpush1.bf16.msra.mxu0 %v881
    %1184 = vmatprep.subr.bf16.mxu0 0
    %1185 = vmatpush1.bf16.msra.mxu0 %v882
    %1186 = vmatprep.subr.bf16.mxu0 0
    %1187 = vmatpush1.bf16.msra.mxu0 %v883
    %1188 = vmatprep.subr.bf16.mxu0 0
    %1189 = vmatpush1.bf16.msra.mxu0 %v884
    %1190 = vmatprep.subr.bf16.mxu0 0
    %1191 = vmatpush1.bf16.msra.mxu0 %v885
    %1192 = vmatprep.mubr.bf16.mxu0 %v459
    %1193 = vmatmul.mubr.bf16.gmra.mrb[0].mxu0 %v458
    %v1194 = vpop.f32.mrb[0].mxu0
    %v1195 = vadd.f32 %v1098, %v1194
    %v1196 = vpop.f32.mrb[0].mxu0
    %v1197 = vpop.f32.mrb[0].mxu0
    %v1198 = vadd.f32 %v1101, %v1197
    %v1199 = vpop.f32.mrb[0].mxu0
    %1200 = vmatprep.mubr.bf16.mxu0 %v467
    %1201 = vmatmul.mubr.bf16.gmra.mrb[0].mxu0 %v466
    %v1202 = vpop.f32.mrb[0].mxu0
    %v1203 = vadd.f32 %v1106, %v1202
    %v1204 = vpop.f32.mrb[0].mxu0
    %v1205 = vpop.f32.mrb[0].mxu0
    %v1206 = vadd.f32 %v1109, %v1205
    %v1207 = vpop.f32.mrb[0].mxu0
    %1208 = vmatprep.mubr.bf16.mxu0 %v475
    %1209 = vmatmul.mubr.bf16.gmra.mrb[0].mxu0 %v474
    %v1210 = vpop.f32.mrb[0].mxu0
    %v1211 = vadd.f32 %v1114, %v1210
    %v1212 = vpop.f32.mrb[0].mxu0
    %v1213 = vpop.f32.mrb[0].mxu0
    %v1214 = vadd.f32 %v1117, %v1213
    %v1215 = vpop.f32.mrb[0].mxu0
    %1216 = vmatprep.mubr.bf16.mxu0 %v483
    %1217 = vmatmul.mubr.bf16.gmra.mrb[0].mxu0 %v482
    %v1218 = vpop.f32.mrb[0].mxu0
    %v1219 = vadd.f32 %v1122, %v1218
    %v1220 = vpop.f32.mrb[0].mxu0
    %v1221 = vpop.f32.mrb[0].mxu0
    %v1222 = vadd.f32 %v1125, %v1221
    %v1223 = vpop.f32.mrb[0].mxu0
    %1224 = vmatprep.mubr.bf16.mxu0 %v491
    %1225 = vmatmul.mubr.bf16.gmra.mrb[0].mxu0 %v490
    %v1226 = vpop.f32.mrb[0].mxu0
    %v1227 = vadd.f32 %v1130, %v1226
    %v1228 = vpop.f32.mrb[0].mxu0
    %v1229 = vpop.f32.mrb[0].mxu0
    %v1230 = vadd.f32 %v1133, %v1229
    %v1231 = vpop.f32.mrb[0].mxu0
    %1232 = vmatprep.mubr.bf16.mxu0 %v499
    %1233 = vmatmul.mubr.bf16.gmra.mrb[0].mxu0 %v498
    %v1234 = vpop.f32.mrb[0].mxu0
    %v1235 = vadd.f32 %v1138, %v1234
    %v1236 = vpop.f32.mrb[0].mxu0
    %v1237 = vpop.f32.mrb[0].mxu0
    %v1238 = vadd.f32 %v1141, %v1237
    %v1239 = vpop.f32.mrb[0].mxu0
    %1240 = vmatprep.mubr.bf16.mxu0 %v507
    %1241 = vmatmul.mubr.bf16.gmra.mrb[0].mxu0 %v506
    %v1242 = vpop.f32.mrb[0].mxu0
    %v1243 = vadd.f32 %v1146, %v1242
    %v1244 = vpop.f32.mrb[0].mxu0
    %v1245 = vpop.f32.mrb[0].mxu0
    %v1246 = vadd.f32 %v1149, %v1245
    %v1247 = vpop.f32.mrb[0].mxu0
    %1248 = vmatprep.mubr.bf16.mxu0 %v515
    %1249 = vmatmul.mubr.bf16.gmra.mrb[0].mxu0 %v514
    %v1250 = vpop.f32.mrb[0].mxu0
    %v1251 = vadd.f32 %v1154, %v1250
    %v1252 = vpop.f32.mrb[0].mxu0
    %v1253 = vpop.f32.mrb[0].mxu0
    %v1254 = vadd.f32 %v1157, %v1253
    %v1255 = vpop.f32.mrb[0].mxu0
    %1256 = vdwg.mxu0
    %1257 = vmatprep.subr.bf16.mxu0 0
    %1258 = vmatpush1.bf16.msra.mxu0 %v886
    %1259 = vmatprep.subr.bf16.mxu0 0
    %1260 = vmatpush1.bf16.msra.mxu0 %v887
    %1261 = vmatprep.subr.bf16.mxu0 0
    %1262 = vmatpush1.bf16.msra.mxu0 %v888
    %1263 = vmatprep.subr.bf16.mxu0 0
    %1264 = vmatpush1.bf16.msra.mxu0 %v889
    %1265 = vmatprep.subr.bf16.mxu0 0
    %1266 = vmatpush1.bf16.msra.mxu0 %v890
    %1267 = vmatprep.subr.bf16.mxu0 0
    %1268 = vmatpush1.bf16.msra.mxu0 %v891
    %1269 = vmatprep.subr.bf16.mxu0 0
    %1270 = vmatpush1.bf16.msra.mxu0 %v892
    %1271 = vmatprep.subr.bf16.mxu0 0
    %1272 = vmatpush1.bf16.msra.mxu0 %v893
    %1273 = vmatprep.subr.bf16.mxu0 0
    %1274 = vmatpush1.bf16.msra.mxu0 %v894
    %1275 = vmatprep.subr.bf16.mxu0 0
    %1276 = vmatpush1.bf16.msra.mxu0 %v895
    %1277 = vmatprep.subr.bf16.mxu0 0
    %1278 = vmatpush1.bf16.msra.mxu0 %v896
    %1279 = vmatprep.subr.bf16.mxu0 0
    %1280 = vmatpush1.bf16.msra.mxu0 %v897
    %1281 = vmatprep.subr.bf16.mxu0 0
    %1282 = vmatpush1.bf16.msra.mxu0 %v898
    %1283 = vmatprep.subr.bf16.mxu0 0
    %1284 = vmatpush1.bf16.msra.mxu0 %v899
    %1285 = vmatprep.subr.bf16.mxu0 0
    %1286 = vmatpush1.bf16.msra.mxu0 %v900
    %1287 = vmatprep.subr.bf16.mxu0 0
    %1288 = vmatpush1.bf16.msra.mxu0 %v901
    %1289 = vmatprep.mubr.bf16.mxu0 %v461
    %1290 = vmatmul.mubr.bf16.gmra.mrb[0].mxu0 %v460
    %v1291 = vpop.f32.mrb[0].mxu0
    %v1292 = vadd.f32 %v1195, %v1291
    %v1293 = vpop.f32.mrb[0].mxu0
    %v1294 = vpop.f32.mrb[0].mxu0
    %v1295 = vadd.f32 %v1198, %v1294
    %v1296 = vpop.f32.mrb[0].mxu0
    %1297 = vmatprep.mubr.bf16.mxu0 %v469
    %1298 = vmatmul.mubr.bf16.gmra.mrb[0].mxu0 %v468
    %v1299 = vpop.f32.mrb[0].mxu0
    %v1300 = vadd.f32 %v1203, %v1299
    %v1301 = vpop.f32.mrb[0].mxu0
    %v1302 = vpop.f32.mrb[0].mxu0
    %v1303 = vadd.f32 %v1206, %v1302
    %v1304 = vpop.f32.mrb[0].mxu0
    %1305 = vmatprep.mubr.bf16.mxu0 %v477
    %1306 = vmatmul.mubr.bf16.gmra.mrb[0].mxu0 %v476
    %v1307 = vpop.f32.mrb[0].mxu0
    %v1308 = vadd.f32 %v1211, %v1307
    %v1309 = vpop.f32.mrb[0].mxu0
    %v1310 = vpop.f32.mrb[0].mxu0
    %v1311 = vadd.f32 %v1214, %v1310
    %v1312 = vpop.f32.mrb[0].mxu0
    %1313 = vmatprep.mubr.bf16.mxu0 %v485
    %1314 = vmatmul.mubr.bf16.gmra.mrb[0].mxu0 %v484
    %v1315 = vpop.f32.mrb[0].mxu0
    %v1316 = vadd.f32 %v1219, %v1315
    %v1317 = vpop.f32.mrb[0].mxu0
    %v1318 = vpop.f32.mrb[0].mxu0
    %v1319 = vadd.f32 %v1222, %v1318
    %v1320 = vpop.f32.mrb[0].mxu0
    %1321 = vmatprep.mubr.bf16.mxu0 %v493
    %1322 = vmatmul.mubr.bf16.gmra.mrb[0].mxu0 %v492
    %v1323 = vpop.f32.mrb[0].mxu0
    %v1324 = vadd.f32 %v1227, %v1323
    %v1325 = vpop.f32.mrb[0].mxu0
    %v1326 = vpop.f32.mrb[0].mxu0
    %v1327 = vadd.f32 %v1230, %v1326
    %v1328 = vpop.f32.mrb[0].mxu0
    %1329 = vmatprep.mubr.bf16.mxu0 %v501
    %1330 = vmatmul.mubr.bf16.gmra.mrb[0].mxu0 %v500
    %v1331 = vpop.f32.mrb[0].mxu0
    %v1332 = vadd.f32 %v1235, %v1331
    %v1333 = vpop.f32.mrb[0].mxu0
    %v1334 = vpop.f32.mrb[0].mxu0
    %v1335 = vadd.f32 %v1238, %v1334
    %v1336 = vpop.f32.mrb[0].mxu0
    %1337 = vmatprep.mubr.bf16.mxu0 %v509
    %1338 = vmatmul.mubr.bf16.gmra.mrb[0].mxu0 %v508
    %v1339 = vpop.f32.mrb[0].mxu0
    %v1340 = vadd.f32 %v1243, %v1339
    %v1341 = vpop.f32.mrb[0].mxu0
    %v1342 = vpop.f32.mrb[0].mxu0
    %v1343 = vadd.f32 %v1246, %v1342
    %v1344 = vpop.f32.mrb[0].mxu0
    %1345 = vmatprep.mubr.bf16.mxu0 %v517
    %1346 = vmatmul.mubr.bf16.gmra.mrb[0].mxu0 %v516
    %v1347 = vpop.f32.mrb[0].mxu0
    %v1348 = vadd.f32 %v1251, %v1347
    %v1349 = vpop.f32.mrb[0].mxu0
    %v1350 = vpop.f32.mrb[0].mxu0
    %v1351 = vadd.f32 %v1254, %v1350
    %v1352 = vpop.f32.mrb[0].mxu0
    %1353 = vdwg.mxu0
    %v1354 = vmax.f32 %v1292, 0.0
    %v1355 = vmax.f32 %v1295, 0.0
    %v1356 = vmax.f32 %v1300, 0.0
    %v1357 = vmax.f32 %v1303, 0.0
    %v1358 = vmax.f32 %v1308, 0.0
    %v1359 = vmax.f32 %v1311, 0.0
    %v1360 = vmax.f32 %v1316, 0.0
    %v1361 = vmax.f32 %v1319, 0.0
    %v1362 = vmax.f32 %v1324, 0.0
    %v1363 = vmax.f32 %v1327, 0.0
    %v1364 = vmax.f32 %v1332, 0.0
    %v1365 = vmax.f32 %v1335, 0.0
    %v1366 = vmax.f32 %v1340, 0.0
    %v1367 = vmax.f32 %v1343, 0.0
    %v1368 = vmax.f32 %v1348, 0.0
    %v1369 = vmax.f32 %v1351, 0.0
    %v1370 = vpack.c.bf16 %v1355, %v1354
    %v1371 = vpack.c.bf16 %v1357, %v1356
    %v1372 = vpack.c.bf16 %v1359, %v1358
    %v1373 = vpack.c.bf16 %v1361, %v1360
    %v1374 = vpack.c.bf16 %v1363, %v1362
    %v1375 = vpack.c.bf16 %v1365, %v1364
    %v1376 = vpack.c.bf16 %v1367, %v1366
    %v1377 = vpack.c.bf16 %v1369, %v1368
    %v1378 = vld [vmem:[#allocation7] sm:$0xf]
    %v1379 = vld [vmem:[#allocation7 + $0x4] sm:$0xf]
    %v1380 = vld [vmem:[#allocation7 + $0x8] sm:$0xf]
    %v1381 = vld [vmem:[#allocation7 + $0xc] sm:$0xf]
    %v1382 = vld [vmem:[#allocation7 + $0x10] sm:$0xf]
    %v1383 = vld [vmem:[#allocation7 + $0x14] sm:$0xf]
    %v1384 = vld [vmem:[#allocation7 + $0x18] sm:$0xf]
    %v1385 = vld [vmem:[#allocation7 + $0x1c] sm:$0xf]
    %v1386 = vld [vmem:[#allocation7 + $0x20] sm:$0xf]
    %v1387 = vld [vmem:[#allocation7 + $0x24] sm:$0xf]
    %v1388 = vld [vmem:[#allocation7 + $0x28] sm:$0xf]
    %v1389 = vld [vmem:[#allocation7 + $0x2c] sm:$0xf]
    %v1390 = vld [vmem:[#allocation7 + $0x30] sm:$0xf]
    %v1391 = vld [vmem:[#allocation7 + $0x34] sm:$0xf]
    %v1392 = vld [vmem:[#allocation7 + $0x38] sm:$0xf]
    %v1393 = vld [vmem:[#allocation7 + $0x3c] sm:$0xf]
    %v1394 = vld [vmem:[%s4] sm:$0x1]
    %v1396 = vlaneseq
    %v1397 = vshrl.u32 %v1396, 7
    %v1398 = vsub.s32 0, %v1397
    %v1399 = vrot.slane %v1394, %v1398
    %v1417 = vunpack.c.l.b16 %v1378
    %v1418 = vunpack.c.l.b16 %v1379
    %v1419 = vunpack.c.l.b16 %v1380
    %v1420 = vunpack.c.l.b16 %v1381
    %v1421 = vunpack.c.l.b16 %v1382
    %v1422 = vunpack.c.l.b16 %v1383
    %v1423 = vunpack.c.l.b16 %v1384
    %v1424 = vunpack.c.l.b16 %v1385
    %v1425 = vunpack.c.l.b16 %v1386
    %v1426 = vunpack.c.l.b16 %v1387
    %v1427 = vunpack.c.l.b16 %v1388
    %v1428 = vunpack.c.l.b16 %v1389
    %v1429 = vunpack.c.l.b16 %v1390
    %v1430 = vunpack.c.l.b16 %v1391
    %v1431 = vunpack.c.l.b16 %v1392
    %v1432 = vunpack.c.l.b16 %v1393
    %v1433 = vpack.c.b16 %v1418, %v1417
    %v1434 = vpack.c.b16 %v1420, %v1419
    %v1435 = vpack.c.b16 %v1422, %v1421
    %v1436 = vpack.c.b16 %v1424, %v1423
    %v1437 = vpack.c.b16 %v1426, %v1425
    %v1438 = vpack.c.b16 %v1428, %v1427
    %v1439 = vpack.c.b16 %v1430, %v1429
    %v1440 = vpack.c.b16 %v1432, %v1431
    %1449 = vmatprep.subr.bf16.mxu0 0
    %1450 = vmatpush1.bf16.msra.mxu0 %v1433
    %1451 = vmatprep.subr.bf16.mxu0 0
    %1452 = vmatpush1.bf16.msra.mxu0 %v1434
    %1453 = vmatprep.subr.bf16.mxu0 0
    %1454 = vmatpush1.bf16.msra.mxu0 %v1435
    %1455 = vmatprep.subr.bf16.mxu0 0
    %1456 = vmatpush1.bf16.msra.mxu0 %v1436
    %1457 = vmatprep.subr.bf16.mxu0 0
    %1458 = vmatpush1.bf16.msra.mxu0 %v1437
    %1459 = vmatprep.subr.bf16.mxu0 0
    %1460 = vmatpush1.bf16.msra.mxu0 %v1438
    %1461 = vmatprep.subr.bf16.mxu0 0
    %1462 = vmatpush1.bf16.msra.mxu0 %v1439
    %1463 = vmatprep.subr.bf16.mxu0 0
    %1464 = vmatpush1.bf16.msra.mxu0 %v1440
    %1465 = vmatprep.subr.bf16.mxu0 0
    %1466 = vmatpush1.bf16.msra.mxu0 0
    %1467 = vmatprep.subr.bf16.mxu0 0
    %1468 = vmatpush1.bf16.msra.mxu0 0
    %1469 = vmatprep.subr.bf16.mxu0 0
    %1470 = vmatpush1.bf16.msra.mxu0 0
    %1471 = vmatprep.subr.bf16.mxu0 0
    %1472 = vmatpush1.bf16.msra.mxu0 0
    %1473 = vmatprep.subr.bf16.mxu0 0
    %1474 = vmatpush1.bf16.msra.mxu0 0
    %1475 = vmatprep.subr.bf16.mxu0 0
    %1476 = vmatpush1.bf16.msra.mxu0 0
    %1477 = vmatprep.subr.bf16.mxu0 0
    %1478 = vmatpush1.bf16.msra.mxu0 0
    %1479 = vmatprep.subr.bf16.mxu0 0
    %1480 = vmatpush1.bf16.msra.mxu0 0
    %1481 = vmatprep.mubr.bf16.mxu0 0
    %1482 = vmatmul.mubr.bf16.gmra.mrb[0].mxu0 %v1370
    %v1483 = vpop.f32.mrb[0].mxu0
    %v1484 = vadd.f32 %v1399, %v1483
    %v1485 = vpop.f32.mrb[0].mxu0
    %v1486 = vpop.f32.mrb[0].mxu0
    %v1487 = vadd.f32 %v1399, %v1486
    %v1488 = vpop.f32.mrb[0].mxu0
    %1489 = vmatprep.mubr.bf16.mxu0 0
    %1490 = vmatmul.mubr.bf16.gmra.mrb[0].mxu0 %v1371
    %v1491 = vpop.f32.mrb[0].mxu0
    %v1492 = vadd.f32 %v1399, %v1491
    %v1493 = vpop.f32.mrb[0].mxu0
    %v1494 = vpop.f32.mrb[0].mxu0
    %v1495 = vadd.f32 %v1399, %v1494
    %v1496 = vpop.f32.mrb[0].mxu0
    %1497 = vmatprep.mubr.bf16.mxu0 0
    %1498 = vmatmul.mubr.bf16.gmra.mrb[0].mxu0 %v1372
    %v1499 = vpop.f32.mrb[0].mxu0
    %v1500 = vadd.f32 %v1399, %v1499
    %v1501 = vpop.f32.mrb[0].mxu0
    %v1502 = vpop.f32.mrb[0].mxu0
    %v1503 = vadd.f32 %v1399, %v1502
    %v1504 = vpop.f32.mrb[0].mxu0
    %1505 = vmatprep.mubr.bf16.mxu0 0
    %1506 = vmatmul.mubr.bf16.gmra.mrb[0].mxu0 %v1373
    %v1507 = vpop.f32.mrb[0].mxu0
    %v1508 = vadd.f32 %v1399, %v1507
    %v1509 = vpop.f32.mrb[0].mxu0
    %v1510 = vpop.f32.mrb[0].mxu0
    %v1511 = vadd.f32 %v1399, %v1510
    %v1512 = vpop.f32.mrb[0].mxu0
    %1513 = vmatprep.mubr.bf16.mxu0 0
    %1514 = vmatmul.mubr.bf16.gmra.mrb[0].mxu0 %v1374
    %v1515 = vpop.f32.mrb[0].mxu0
    %v1516 = vadd.f32 %v1399, %v1515
    %v1517 = vpop.f32.mrb[0].mxu0
    %v1518 = vpop.f32.mrb[0].mxu0
    %v1519 = vadd.f32 %v1399, %v1518
    %v1520 = vpop.f32.mrb[0].mxu0
    %1521 = vmatprep.mubr.bf16.mxu0 0
    %1522 = vmatmul.mubr.bf16.gmra.mrb[0].mxu0 %v1375
    %v1523 = vpop.f32.mrb[0].mxu0
    %v1524 = vadd.f32 %v1399, %v1523
    %v1525 = vpop.f32.mrb[0].mxu0
    %v1526 = vpop.f32.mrb[0].mxu0
    %v1527 = vadd.f32 %v1399, %v1526
    %v1528 = vpop.f32.mrb[0].mxu0
    %1529 = vmatprep.mubr.bf16.mxu0 0
    %1530 = vmatmul.mubr.bf16.gmra.mrb[0].mxu0 %v1376
    %v1531 = vpop.f32.mrb[0].mxu0
    %v1532 = vadd.f32 %v1399, %v1531
    %v1533 = vpop.f32.mrb[0].mxu0
    %v1534 = vpop.f32.mrb[0].mxu0
    %v1535 = vadd.f32 %v1399, %v1534
    %v1536 = vpop.f32.mrb[0].mxu0
    %1537 = vmatprep.mubr.bf16.mxu0 0
    %1538 = vmatmul.mubr.bf16.gmra.mrb[0].mxu0 %v1377
    %v1539 = vpop.f32.mrb[0].mxu0
    %v1540 = vadd.f32 %v1399, %v1539
    %v1541 = vpop.f32.mrb[0].mxu0
    %v1542 = vpop.f32.mrb[0].mxu0
    %v1543 = vadd.f32 %v1399, %v1542
    %v1544 = vpop.f32.mrb[0].mxu0
    %1545 = vdwg.mxu0
    %1546 = vst [vmem:[#allocation8] sm:$0xff] %v1484
    %1547 = vst [vmem:[#allocation8 + $0x8] sm:$0xff] %v1487
    %1548 = vst [vmem:[#allocation8 + $0x10] sm:$0xff] %v1492
    %1549 = vst [vmem:[#allocation8 + $0x18] sm:$0xff] %v1495
    %1550 = vst [vmem:[#allocation8 + $0x20] sm:$0xff] %v1500
    %1551 = vst [vmem:[#allocation8 + $0x28] sm:$0xff] %v1503
    %1552 = vst [vmem:[#allocation8 + $0x30] sm:$0xff] %v1508
    %1553 = vst [vmem:[#allocation8 + $0x38] sm:$0xff] %v1511
    %1554 = vst [vmem:[#allocation8 + $0x40] sm:$0xff] %v1516
    %1555 = vst [vmem:[#allocation8 + $0x48] sm:$0xff] %v1519
    %1556 = vst [vmem:[#allocation8 + $0x50] sm:$0xff] %v1524
    %1557 = vst [vmem:[#allocation8 + $0x58] sm:$0xff] %v1527
    %1558 = vst [vmem:[#allocation8 + $0x60] sm:$0xff] %v1532
    %1559 = vst [vmem:[#allocation8 + $0x68] sm:$0xff] %v1535
    %1560 = vst [vmem:[#allocation8 + $0x70] sm:$0xff] %v1540
    %1561 = vst [vmem:[#allocation8 + $0x78] sm:$0xff] %v1543
    // Predicated region
    $region34: #{tpu_custom_call.1} parent=1 // pred_check
      _
    $region35: #{tpu_custom_call.1} parent=1 // pred_check_branch
      %1563 = sbr.rel (0) target = $region37
    $region36: #{tpu_custom_call.1} parent=1 // pred_region
      %s1565 = ssub.s32 2048, 2048
      %1566 = vsyncadd [#allocation4], %s1565
      %s1567 = sshll.u32 [#allocation8], 4
      %s1568 = int_to_ptr.vmem [resolvable:$true] %s1567
      %1573 = dma.vmem_to_hbm [thread:$0]  %s1568, 2048, %s5, [#allocation4], 128, 128, 8
    $region37: #{tpu_custom_call.1} parent=1 // pred_fallthru
      _
    // Predicated region
    $region38: #{tpu_custom_call.1} parent=1 // pred_check
      _
    $region39: #{tpu_custom_call.1} parent=1 // pred_check_branch
      %1575 = sbr.rel (0) target = $region41
    $region40: #{tpu_custom_call.1} parent=1 // pred_region
      %1576 = dma.done [#allocation4], 2048
    $region41: #{tpu_custom_call.1} parent=1 // pred_fallthru
      _
    %1577 = vsyncpa [#allocation3], 1
    %1578 = vsyncpa [#allocation6], 1
    %1579 = vsyncpa [#allocation4], 1

</llo_original>
